<compile_context>
chip_gen: v7x
topology: tpu7x:2x2x1
jax: 0.10.0
libtpu: 0.0.40
codegen_flags: <defaults>
</compile_context>

<pallas_src>
import jax
import jax.numpy as jnp
from jax.experimental import pallas as pl
from jax.experimental.pallas import tpu as pltpu


def _round_up(a, m):
    return ((a + m - 1) // m) * m


def _mlp_kernel(x_ref, w1_ref, b1_ref, w2_ref, b2_ref, o_ref):
    # Layer 1 on the MXU with f32 accumulation: (TB, D) @ (D, 128) -> (TB, 128).
    h = jnp.dot(x_ref[...], w1_ref[...], preferred_element_type=jnp.float32)
    h = jnp.maximum(h + b1_ref[...], 0.0)          # bias + ReLU on the VPU
    # Layer 2: output width is 1, so skip the MXU entirely: elementwise multiply
    # by the (1, 128) w2 row and reduce over lanes (VPU + XLU slots, hidden
    # under the first matmul's bundle slack).
    y = jnp.sum(h * w2_ref[...], axis=-1)          # (TB,)
    # Lane-dense store: one (1, TB) row instead of a masked (TB, 1) column.
    o_ref[...] = (y.reshape(1, -1) + b2_ref[...]).astype(o_ref.dtype)


def cost_network_forward(x, w1, b1, w2, b2, *, tile_b=512, use_bf16=False):
    """x: (B, D) float -> (B, 1) float32. Matches nn.Linear(D,64)+ReLU+nn.Linear(64,1).

    use_bf16: cast x/W1 to bfloat16 at the call boundary (v6e/v7x: ~2x effective
    HBM bandwidth on the streamed x); accumulation stays f32. Loosen reference
    tolerances when enabling.
    """
    B, D = x.shape
    H = w1.shape[1]

    # ---- hidden-dim padding: 64 -> 128 so h occupies whole 128-lane vregs ----
    Hp = max(128, _round_up(H, 128))
    w1p = jnp.pad(w1, ((0, 0), (0, Hp - H)))
    b1p = jnp.pad(b1, (0, Hp - H)).reshape(1, Hp)
    w2p = jnp.pad(w2.reshape(-1), (0, Hp - H)).reshape(1, Hp)   # (1, Hp) row
    b2p = b2.reshape(1, 1)

    # ---- batch tiling: big tiles, ragged tail handled by zero padding --------
    tile_b = max(8, _round_up(int(tile_b), 8))
    if _round_up(B, 8) <= tile_b:
        tile_b = _round_up(B, 8)          # single tile covers the whole batch
    else:
        tile_b = _round_up(tile_b, 128)   # multi-tile: keep output blocks lane-dense
    B_pad = _round_up(B, tile_b)
    if B_pad != B:
        x = jnp.pad(x, ((0, B_pad - B), (0, 0)))

    if use_bf16:
        x = x.astype(jnp.bfloat16)
        w1p = w1p.astype(jnp.bfloat16)

    grid = (pl.cdiv(B_pad, tile_b),)

    # ---- scoped VMEM budget: double-buffered x/out tiles + resident weights ---
    x_item = jnp.dtype(x.dtype).itemsize
    w_item = jnp.dtype(w1p.dtype).itemsize
    vmem_need = (
        2 * tile_b * D * x_item        # x tiles (double buffered)
        + 2 * tile_b * 4               # out tiles (double buffered)
        + 2 * D * Hp * w_item          # W1 (conservative: count both buffers)
        + 8 * Hp * 4                   # b1 / w2 / b2 + slack
    )
    vmem_limit = int(min(max(vmem_need + (4 << 20), 32 << 20), 48 << 20))

    out = pl.pallas_call(
        _mlp_kernel,
        out_shape=jax.ShapeDtypeStruct((1, B_pad), jnp.float32),
        grid_spec=pltpu.PrefetchScalarGridSpec(
            num_scalar_prefetch=0,
            grid=grid,
            in_specs=[
                pl.BlockSpec((tile_b, D), lambda i: (i, 0)),   # x tile
                pl.BlockSpec((D, Hp), lambda i: (0, 0)),       # W1 (resident, constant index)
                pl.BlockSpec((1, Hp), lambda i: (0, 0)),       # b1
                pl.BlockSpec((1, Hp), lambda i: (0, 0)),       # w2 row
                pl.BlockSpec((1, 1), lambda i: (0, 0)),        # b2
            ],
            out_specs=pl.BlockSpec((1, tile_b), lambda i: (0, i)),  # lane-dense
        ),
        compiler_params=pltpu.CompilerParams(
            dimension_semantics=("parallel",),   # shards batch axis across v7x's 2 TCs
            vmem_limit_bytes=vmem_limit,
        ),
    )(x, w1p, b1p, w2p, b2p)

    return out[0, :B].reshape(B, 1)


def _init_params(key, input_dim, hidden=64):
    # Deterministic synthetic init mimicking PyTorch's uniform(-1/sqrt(fan_in), 1/sqrt(fan_in)).
    k1, k2, k3, k4 = jax.random.split(key, 4)
    lim1 = 1.0 / jnp.sqrt(jnp.float32(input_dim))
    lim2 = 1.0 / jnp.sqrt(jnp.float32(hidden))
    w1 = jax.random.uniform(k1, (input_dim, hidden), jnp.float32, -lim1, lim1)
    b1 = jax.random.uniform(k2, (hidden,), jnp.float32, -lim1, lim1)
    w2 = jax.random.uniform(k3, (hidden, 1), jnp.float32, -lim2, lim2)
    b2 = jax.random.uniform(k4, (1,), jnp.float32, -lim2, lim2)
    return w1, b1, w2, b2


if __name__ == "__main__":
    key = jax.random.PRNGKey(0)
    kx, kp = jax.random.split(key)

    B, D = 16, 32            # small demo shapes: batch=16, input_dim=32
    x = jax.random.normal(kx, (B, D), jnp.float32)
    w1, b1, w2, b2 = _init_params(kp, D)

    out = cost_network_forward(x, w1, b1, w2, b2, tile_b=512)
    out = jax.block_until_ready(out)

    # Pure-JAX reference check of the same math (f32 end to end).
    ref = jnp.maximum(x @ w1 + b1, 0.0) @ w2 + b2
    assert out.shape == (B, 1)
    assert jnp.allclose(out, ref, atol=1e-5, rtol=1e-5), "mismatch vs reference"

    print("KERNEL_OK")
</pallas_src>

<mosaic_0001>
module attributes {stable_mosaic.version = 11 : i64} {
  func.func @_mlp_kernel(%arg0: i32, %arg1: memref<16x32xf32, #tpu.memory_space<vmem>>, %arg2: memref<32x128xf32, #tpu.memory_space<vmem>>, %arg3: memref<1x128xf32, #tpu.memory_space<vmem>>, %arg4: memref<1x128xf32, #tpu.memory_space<vmem>>, %arg5: memref<1x1xf32, #tpu.memory_space<vmem>>, %arg6: memref<1x16xf32, #tpu.memory_space<vmem>>) attributes {dimension_semantics = [#tpu.dimension_semantics<parallel>], iteration_bounds = array<i64: 1>, scalar_prefetch = 0 : i64, scratch_operands = 0 : i64, tpu.core_type = #tpu.core_type<tc>, window_params = [{transform_indices = @transform_0, window_bounds = array<i64: 16, 32>}, {pipeline_mode = #tpu.pipeline_mode<synchronous>, transform_indices = @transform_1, window_bounds = array<i64: 32, 128>}, {pipeline_mode = #tpu.pipeline_mode<synchronous>, transform_indices = @transform_2, window_bounds = array<i64: 1, 128>}, {pipeline_mode = #tpu.pipeline_mode<synchronous>, transform_indices = @transform_3, window_bounds = array<i64: 1, 128>}, {pipeline_mode = #tpu.pipeline_mode<synchronous>, transform_indices = @transform_4, window_bounds = array<i64: 1, 1>}, {transform_indices = @transform_5, window_bounds = array<i64: 1, 16>}]} {
    %c0 = arith.constant 0 : index
    %c0_0 = arith.constant 0 : index
    %0 = vector.load %arg1[%c0, %c0_0] : memref<16x32xf32, #tpu.memory_space<vmem>>, vector<16x32xf32>
    %c0_1 = arith.constant 0 : index
    %c0_2 = arith.constant 0 : index
    %1 = vector.load %arg2[%c0_1, %c0_2] : memref<32x128xf32, #tpu.memory_space<vmem>>, vector<32x128xf32>
    %cst = arith.constant dense<0.000000e+00> : vector<16x128xf32>
    %2 = tpu.matmul %0, %1, %cst {dimension_numbers = #tpu.dot_dimension_numbers<[1], [0], [0], [1], [0, 0, 1, 1], [], []>} : vector<16x32xf32>, vector<32x128xf32>, vector<16x128xf32> -> vector<16x128xf32>
    %c0_3 = arith.constant 0 : index
    %c0_4 = arith.constant 0 : index
    %3 = vector.load %arg3[%c0_3, %c0_4] : memref<1x128xf32, #tpu.memory_space<vmem>>, vector<1x128xf32>
    %4 = vector.broadcast %3 : vector<1x128xf32> to vector<16x128xf32>
    %5 = arith.addf %2, %4 : vector<16x128xf32>
    %cst_5 = arith.constant 0.000000e+00 : f32
    %6 = vector.broadcast %cst_5 : f32 to vector<16x128xf32>
    %7 = arith.maximumf %5, %6 : vector<16x128xf32>
    %c0_6 = arith.constant 0 : index
    %c0_7 = arith.constant 0 : index
    %8 = vector.load %arg4[%c0_6, %c0_7] : memref<1x128xf32, #tpu.memory_space<vmem>>, vector<1x128xf32>
    %9 = vector.broadcast %8 : vector<1x128xf32> to vector<16x128xf32>
    %10 = arith.mulf %7, %9 : vector<16x128xf32>
    %cst_8 = arith.constant dense<0.000000e+00> : vector<16xf32>
    %11 = vector.multi_reduction <add>, %10, %cst_8 [1] : vector<16x128xf32> to vector<16xf32>
    %12 = vector.shape_cast %11 : vector<16xf32> to vector<1x16xf32>
    %c0_9 = arith.constant 0 : index
    %c0_10 = arith.constant 0 : index
    %13 = vector.load %arg5[%c0_9, %c0_10] : memref<1x1xf32, #tpu.memory_space<vmem>>, vector<1x1xf32>
    %14 = vector.broadcast %13 : vector<1x1xf32> to vector<1x16xf32>
    %15 = arith.addf %12, %14 : vector<1x16xf32>
    %c0_11 = arith.constant 0 : index
    %c0_12 = arith.constant 0 : index
    %16 = vector.load %arg6[%c0_11, %c0_12] : memref<1x16xf32, #tpu.memory_space<vmem>>, vector<1x16xf32>
    tpu.vector_store %arg6[%c0_11, %c0_12], %15 {strides = array<i32>} : memref<1x16xf32, #tpu.memory_space<vmem>>, vector<1x16xf32>,
    return
  }
  func.func @transform_0(%arg0: i32) -> (i32, i32) {
    %c0_i32 = arith.constant 0 : i32
    %c0_i32_0 = arith.constant 0 : i32
    return %arg0, %c0_i32 : i32, i32
  }
  func.func @transform_1(%arg0: i32) -> (i32, i32) {
    %c0_i32 = arith.constant 0 : i32
    %c0_i32_0 = arith.constant 0 : i32
    %c0_i32_1 = arith.constant 0 : i32
    return %c0_i32, %c0_i32_0 : i32, i32
  }
  func.func @transform_2(%arg0: i32) -> (i32, i32) {
    %c0_i32 = arith.constant 0 : i32
    %c0_i32_0 = arith.constant 0 : i32
    %c0_i32_1 = arith.constant 0 : i32
    return %c0_i32, %c0_i32_0 : i32, i32
  }
  func.func @transform_3(%arg0: i32) -> (i32, i32) {
    %c0_i32 = arith.constant 0 : i32
    %c0_i32_0 = arith.constant 0 : i32
    %c0_i32_1 = arith.constant 0 : i32
    return %c0_i32, %c0_i32_0 : i32, i32
  }
  func.func @transform_4(%arg0: i32) -> (i32, i32) {
    %c0_i32 = arith.constant 0 : i32
    %c0_i32_0 = arith.constant 0 : i32
    %c0_i32_1 = arith.constant 0 : i32
    return %c0_i32, %c0_i32_0 : i32, i32
  }
  func.func @transform_5(%arg0: i32) -> (i32, i32) {
    %c0_i32 = arith.constant 0 : i32
    %c0_i32_0 = arith.constant 0 : i32
    return %c0_i32, %arg0 : i32, i32
  }
}

</mosaic_0001>

<llo_original>
// kernel: tpu_custom_call.1
$region0: #{tpu_custom_call.1}
  #allocation0 [shape = 'u32[]', space=smem, size = 0x4, offset = 0x4, fixed_abs, tag = 'smem constant byte address 0x4 - core index']
  #allocation1 [shape = 'u32[144,128]{1,0:T(1,128)}', space=vmem, size = 0x12000, scoped, tag = 'internal scratch']
  #allocation2 [shape = 'f32[1,1]{1,0:T(1,128)S(1)}', space=vmem, size = 0x200, scoped, tag = 'scoped memory for tpu_custom_call.1']
  %s0 = inlined_call_operand.hbm [shape: f32[16,32], index: 0, kind: input, shape index: {}]
  %s1 = inlined_call_operand.hbm [shape: f32[32,128], index: 1, kind: input, shape index: {}]
  %s2 = inlined_call_operand.vmem [shape: f32[1,128], index: 2, kind: input, shape index: {}]
  %s3 = inlined_call_operand.vmem [shape: f32[1,128], index: 3, kind: input, shape index: {}]
  %s4 = inlined_call_operand.<no memory space> [shape: f32[1,1], index: 4, kind: input, shape index: {}]
  %s5 = inlined_call_operand.hbm [shape: f32[1,16], index: 5, kind: output, shape index: {}]
  %s6 = sld [smem:[#allocation0]]
  $region38: #{tpu_custom_call.1} parent=0
    _
  %s8 = ssub.s32 1, %s6
  %s9 = scalar_select 0, %s8, %s6
  %v10 = vstv %s4
  %11 = vst [vmem:[#allocation2] sm:$0x1] %v10
  $region1: #{tpu_custom_call.1} parent=0
    #allocation3 [shape = 'u8[8192]{0}', space=vmem, size = 0x2000, scoped, tag = 'input window, operand 0, single buffered']
    #allocation4 [shape = 's32[1]{0}', space=sflag, size = 0x4, scoped, tag = 'scoped memory for tpu_custom_call.1']
    #allocation5 [shape = 's32[1]{0}', space=sflag, size = 0x4, scoped, tag = 'scoped memory for tpu_custom_call.1']
    #allocation6 [shape = 'u8[16384]{0}', space=vmem, size = 0x4000, scoped, tag = 'input window, operand 1, single buffered']
    #allocation7 [shape = 's32[1]{0}', space=sflag, size = 0x4, scoped, tag = 'scoped memory for tpu_custom_call.1']
    #allocation8 [shape = 'u8[512]{0}', space=vmem, size = 0x400, scoped, tag = 'output window, operand 0, single buffered']
    %12 = vsyncpa [#allocation4], 0
    %13 = vsyncpa [#allocation7], 0
    %14 = vsyncpa [#allocation5], 0
    // Predicated region
    $region2: #{tpu_custom_call.1} parent=1 // pred_check
      _
    $region3: #{tpu_custom_call.1} parent=1 // pred_check_branch
      %16 = sbr.rel (0) target = $region5
    $region4: #{tpu_custom_call.1} parent=1 // pred_region
      %s18 = ssub.s32 256, 256
      %19 = vsyncadd [#allocation4], %s18
      %s20 = sshll.u32 [#allocation3], 4
      %s21 = int_to_ptr.vmem [resolvable:$true] %s20
      %26 = dma.hbm_to_vmem [thread:$0]  %s0, 256, %s21, [#allocation4], 128, 128, 8
    $region5: #{tpu_custom_call.1} parent=1 // pred_fallthru
      _
    // Predicated region
    $region6: #{tpu_custom_call.1} parent=1 // pred_check
      _
    $region7: #{tpu_custom_call.1} parent=1 // pred_check_branch
      %28 = sbr.rel (0) target = $region9
    $region8: #{tpu_custom_call.1} parent=1 // pred_region
      %s30 = ssub.s32 512, 512
      %31 = vsyncadd [#allocation7], %s30
      %s32 = sshll.u32 [#allocation6], 4
      %s33 = int_to_ptr.vmem [resolvable:$true] %s32
      %38 = dma.hbm_to_vmem [thread:$0]  %s1, 512, %s33, [#allocation7], 128, 128, 8
    $region9: #{tpu_custom_call.1} parent=1 // pred_fallthru
      _
    // Predicated region
    $region10: #{tpu_custom_call.1} parent=1 // pred_check
      _
    $region11: #{tpu_custom_call.1} parent=1 // pred_check_branch
      %40 = sbr.rel (0) target = $region13
    $region12: #{tpu_custom_call.1} parent=1 // pred_region
      _
    $region13: #{tpu_custom_call.1} parent=1 // pred_fallthru
      _
    // Predicated region
    $region14: #{tpu_custom_call.1} parent=1 // pred_check
      _
    $region15: #{tpu_custom_call.1} parent=1 // pred_check_branch
      %42 = sbr.rel (0) target = $region17
    $region16: #{tpu_custom_call.1} parent=1 // pred_region
      _
    $region17: #{tpu_custom_call.1} parent=1 // pred_fallthru
      _
    // Predicated region
    $region18: #{tpu_custom_call.1} parent=1 // pred_check
      _
    $region19: #{tpu_custom_call.1} parent=1 // pred_check_branch
      %44 = sbr.rel (0) target = $region21
    $region20: #{tpu_custom_call.1} parent=1 // pred_region
      _
    $region21: #{tpu_custom_call.1} parent=1 // pred_fallthru
      _
    // Predicated region
    $region22: #{tpu_custom_call.1} parent=1 // pred_check
      _
    $region23: #{tpu_custom_call.1} parent=1 // pred_check_branch
      %46 = sbr.rel (0) target = $region25
    $region24: #{tpu_custom_call.1} parent=1 // pred_region
      %47 = dma.done [#allocation4], 256
    $region25: #{tpu_custom_call.1} parent=1 // pred_fallthru
      _
    // Predicated region
    $region26: #{tpu_custom_call.1} parent=1 // pred_check
      _
    $region27: #{tpu_custom_call.1} parent=1 // pred_check_branch
      %49 = sbr.rel (0) target = $region29
    $region28: #{tpu_custom_call.1} parent=1 // pred_region
      %50 = dma.done [#allocation7], 512
    $region29: #{tpu_custom_call.1} parent=1 // pred_fallthru
      _
    %v51 = vld [vmem:[#allocation3] sm:$0xff]
    %v52 = vld [vmem:[#allocation3 + $0x8] sm:$0xff]
    %v53 = vld [vmem:[#allocation6] sm:$0xff]
    %v54 = vld [vmem:[#allocation6 + $0x8] sm:$0xff]
    %v55 = vld [vmem:[#allocation6 + $0x10] sm:$0xff]
    %v56 = vld [vmem:[#allocation6 + $0x18] sm:$0xff]
    %v57 = vld [vmem:[%s2] sm:$0x1]
    %v59 = vlaneseq
    %v60 = vshrl.u32 %v59, 7
    %v61 = vsub.s32 0, %v60
    %v62 = vrot.slane %v57, %v61
    %vm64 = vcmask 261120
    %v66 = vsel %vm64, %v51, 0
    %v69 = vsel %vm64, %v52, 0
    %71 = vmatprep.subr.mxu0 0.0
    %72 = vmatpush1.msra.mxu0 %v53
    %73 = vmatprep.subr.mxu0 0.0
    %74 = vmatpush1.msra.mxu0 %v54
    %75 = vmatprep.subr.mxu0 0.0
    %76 = vmatpush1.msra.mxu0 %v55
    %77 = vmatprep.subr.mxu0 0.0
    %78 = vmatpush1.msra.mxu0 %v56
    %79 = vmatprep.subr.mxu0 0.0
    %80 = vmatpush1.msra.mxu0 0.0
    %81 = vmatprep.subr.mxu0 0.0
    %82 = vmatpush1.msra.mxu0 0.0
    %83 = vmatprep.subr.mxu0 0.0
    %84 = vmatpush1.msra.mxu0 0.0
    %85 = vmatprep.subr.mxu0 0.0
    %86 = vmatpush1.msra.mxu0 0.0
    %87 = vmatprep.subr.mxu0 0.0
    %88 = vmatpush1.msra.mxu0 0.0
    %89 = vmatprep.subr.mxu0 0.0
    %90 = vmatpush1.msra.mxu0 0.0
    %91 = vmatprep.subr.mxu0 0.0
    %92 = vmatpush1.msra.mxu0 0.0
    %93 = vmatprep.subr.mxu0 0.0
    %94 = vmatpush1.msra.mxu0 0.0
    %95 = vmatprep.subr.mxu0 0.0
    %96 = vmatpush1.msra.mxu0 0.0
    %97 = vmatprep.subr.mxu0 0.0
    %98 = vmatpush1.msra.mxu0 0.0
    %99 = vmatprep.subr.mxu0 0.0
    %100 = vmatpush1.msra.mxu0 0.0
    %101 = vmatprep.subr.mxu0 0.0
    %102 = vmatpush1.msra.mxu0 0.0
    %103 = vmatprep.subr.mxu0 0.0
    %104 = vmatpush1.msra.mxu0 0.0
    %105 = vmatprep.subr.mxu0 0.0
    %106 = vmatpush1.msra.mxu0 0.0
    %107 = vmatprep.subr.mxu0 0.0
    %108 = vmatpush1.msra.mxu0 0.0
    %109 = vmatprep.subr.mxu0 0.0
    %110 = vmatpush1.msra.mxu0 0.0
    %111 = vmatprep.subr.mxu0 0.0
    %112 = vmatpush1.msra.mxu0 0.0
    %113 = vmatprep.subr.mxu0 0.0
    %114 = vmatpush1.msra.mxu0 0.0
    %115 = vmatprep.subr.mxu0 0.0
    %116 = vmatpush1.msra.mxu0 0.0
    %117 = vmatprep.subr.mxu0 0.0
    %118 = vmatpush1.msra.mxu0 0.0
    %119 = vmatprep.subr.mxu0 0.0
    %120 = vmatpush1.msra.mxu0 0.0
    %121 = vmatprep.subr.mxu0 0.0
    %122 = vmatpush1.msra.mxu0 0.0
    %123 = vmatprep.subr.mxu0 0.0
    %124 = vmatpush1.msra.mxu0 0.0
    %125 = vmatprep.subr.mxu0 0.0
    %126 = vmatpush1.msra.mxu0 0.0
    %127 = vmatprep.subr.mxu0 0.0
    %128 = vmatpush1.msra.mxu0 0.0
    %129 = vmatprep.subr.mxu0 0.0
    %130 = vmatpush1.msra.mxu0 0.0
    %131 = vmatprep.subr.mxu0 0.0
    %132 = vmatpush1.msra.mxu0 0.0
    %133 = vmatprep.subr.mxu0 0.0
    %134 = vmatpush1.msra.mxu0 0.0
    %135 = vmatprep.mubr.f32.mxu0 0.0
    %136 = vmatmul.mubr.f32.gmra.mrb[0].mxu0 %v66
    %v137 = vpop.f32.mrb[0].mxu0
    %v138 = vadd.f32 %v62, %v137
    %v139 = vpop.f32.mrb[0].mxu0
    %140 = vmatprep.mubr.f32.mxu0 0.0
    %141 = vmatmul.mubr.f32.gmra.mrb[0].mxu0 %v69
    %v142 = vpop.f32.mrb[0].mxu0
    %v143 = vadd.f32 %v62, %v142
    %v144 = vpop.f32.mrb[0].mxu0
    %145 = vdwg.mxu0
    %v146 = vmax.f32 %v138, 0.0
    %v147 = vmax.f32 %v143, 0.0
    %v148 = vld [vmem:[%s3] sm:$0x1]
    %v150 = vlaneseq
    %v151 = vshrl.u32 %v150, 7
    %v152 = vsub.s32 0, %v151
    %v153 = vrot.slane %v148, %v152
    %v155 = vmul.f32 %v146, %v153
    %v156 = vmul.f32 %v147, %v153
    %157 = vadd.xlane.f32.xlu0 %v155
    %v158 = vpop.xlane.xlu0 %157
    %159 = vadd.xlane.f32.xlu0 %v156
    %v160 = vpop.xlane.xlu0 %159
    %v161 = vld [vmem:[#allocation2] sm:$0x1]
    %163 = vset.pattern.permute.xlu0 0
    %164 = vperm.xlu0 %163, %v161
    %v165 = vpop.permute.xlu0 %164
    %v167 = vlaneseq
    %v168 = vshrl.u32 %v167, 7
    %v169 = vsub.s32 0, %v168
    %v170 = vrot.slane %v165, %v169
    %v171 = vadd.f32 %v158, %v170
    %v172 = vadd.f32 %v160, %v170
    %v175 = vlaneseq
    %v176 = vand.u32 %v175, 127
    %v177 = vlaneseq
    %v178 = vshrl.u32 %v177, 7
    %v179 = vsub.s32 %v176, %v178
    %v180 = vrot.slane %v171, %v179
    %v181 = vadd.s32 %v176, 4294967288
    %v182 = vlaneseq
    %v183 = vshrl.u32 %v182, 7
    %v184 = vsub.s32 %v181, %v183
    %v185 = vrot.slane %v172, %v184
    %vm186 = vcmask 130112
    %v187 = vsel %vm186, %v185, %v180
    %vm189 = vcmask 122880
    %190 = vst.msk [vmem:[#allocation8] sm:$0x1] %vm189, %v187
    // Predicated region
    $region30: #{tpu_custom_call.1} parent=1 // pred_check
      _
    $region31: #{tpu_custom_call.1} parent=1 // pred_check_branch
      %192 = sbr.rel (0) target = $region33
    $region32: #{tpu_custom_call.1} parent=1 // pred_region
      %s194 = ssub.s32 16, 16
      %195 = vsyncadd [#allocation5], %s194
      %s197 = sshll.u32 [#allocation8], 4
      %s198 = int_to_ptr.vmem [resolvable:$true] %s197
      %200 = dma.vmem_to_hbm [thread:$0]  %s198, 16, %s5, [#allocation5]
    $region33: #{tpu_custom_call.1} parent=1 // pred_fallthru
      _
    // Predicated region
    $region34: #{tpu_custom_call.1} parent=1 // pred_check
      _
    $region35: #{tpu_custom_call.1} parent=1 // pred_check_branch
      %202 = sbr.rel (0) target = $region37
    $region36: #{tpu_custom_call.1} parent=1 // pred_region
      %203 = dma.done [#allocation5], 16
    $region37: #{tpu_custom_call.1} parent=1 // pred_fallthru
      _
    %204 = vsyncpa [#allocation4], 1
    %205 = vsyncpa [#allocation7], 1
    %206 = vsyncpa [#allocation5], 1

</llo_original>
